<compile_context>
chip_gen: v7x
topology: tpu7x:2x2x1
jax: 0.10.0
libtpu: 0.0.40
codegen_flags: <defaults>
</compile_context>

<pallas_src>
import jax
import jax.numpy as jnp
from jax.experimental import pallas as pl
from jax.experimental.pallas import tpu as pltpu

IN_CHANNELS = 32
OUT_CHANNELS = 16
KERNEL_SIZE = 4
STRIDE = 2
PADDING = 1
OUTPUT_PADDING = 1


def _round_up(x, m):
    return (x + m - 1) // m * m


def _pade_tanh_ref(x):
    x2 = x * x
    num = x * (135135.0 + x2 * (17325.0 + x2 * (378.0 + x2)))
    den = 135135.0 + x2 * (62370.0 + x2 * (3150.0 + 28.0 * x2))
    return num / den


def _fused_kernel(x_ref, w_ref, b_ref, o_ref):
    """One (parity, M-tile) grid step.

    x_ref: (1, D, TM)    im2col taps; depth on sublanes, M on lanes
    w_ref: (1, Cout, D)  per-parity weight matrix
    b_ref: (Cout, 1)     fused (conv_bias - extra_bias)
    o_ref: (1, Cout, TM) lane-dense output tile
    """
    acc = jnp.dot(w_ref[0], x_ref[0], preferred_element_type=jnp.float32)
    z = acc + b_ref[...]                      # (Cout,1) lane-broadcast
    z2 = z * z
    num = z * (135135.0 + z2 * (17325.0 + z2 * (378.0 + z2)))
    den = 135135.0 + z2 * (62370.0 + z2 * (3150.0 + 28.0 * z2))
    o_ref[0] = num * pl.reciprocal(den)       # exact recip -> EUP slot, frees VALU


def conv_transpose_bias_tanh(x_nchw, weight, conv_bias, extra_bias):
    """x_nchw: (N, Cin, H, W) f32. weight: (Cin, Cout, K, K). Returns (N, Cout, Ho, Wo)."""
    N, Cin, H, W = x_nchw.shape
    K, S, P, OP = KERNEL_SIZE, STRIDE, PADDING, OUTPUT_PADDING
    Cout = weight.shape[1]
    Ho = (H - 1) * S - 2 * P + K + OP          # = 2H + 1
    Wo = (W - 1) * S - 2 * P + K + OP          # = 2W + 1
    D = 4 * Cin                                # contraction depth per parity (2x2 taps)

    # ---------------- layout glue: parity decomposition + im2col ----------------
    # Output pixel (2i+ph, 2j+pw) =
    #   sum_{th,tw in {0,1}} x[i+ph+th-1, j+pw+tw-1] * weight[:, :, 3-ph-2th, 3-pw-2tw]
    # (out-of-range x rows/cols are zero -> handled by padding (1 low, 2 high)).
    x_nhwc = jnp.transpose(x_nchw, (0, 2, 3, 1)).astype(jnp.float32)
    x_p = jnp.pad(x_nhwc, ((0, 0), (1, 2), (1, 2), (0, 0)))   # (N, H+3, W+3, Cin)

    Hs, Ws = H + 1, W + 1
    Mp = N * Hs * Ws

    cols = []
    wrows = []
    for ph in range(2):
        for pw in range(2):
            x_taps = []
            w_taps = []
            for th in range(2):
                for tw in range(2):
                    x_taps.append(
                        x_p[:, ph + th:ph + th + Hs, pw + tw:pw + tw + Ws, :]
                        .reshape(Mp, Cin))
                    w_taps.append(weight[:, :, 3 - ph - 2 * th, 3 - pw - 2 * tw])
            cols.append(jnp.concatenate(x_taps, axis=1))              # (Mp, D)
            wrows.append(jnp.concatenate(w_taps, axis=0).T)           # (Cout, D)
    x_cols = jnp.stack(cols, axis=0)                                  # (4, Mp, D)
    w_all = jnp.stack(wrows, axis=0).astype(jnp.float32)              # (4, Cout, D)
    b_eff = (conv_bias - extra_bias.reshape(-1)).reshape(Cout, 1).astype(jnp.float32)

    # M tile (lane dim): lane-dense, comfortably within v7x's 64 MiB VMEM.
    TM = min(512, _round_up(Mp, 128))
    Mp_pad = _round_up(Mp, TM)
    x_cols = jnp.pad(x_cols, ((0, 0), (0, Mp_pad - Mp), (0, 0)))
    x_cols = jnp.transpose(x_cols, (0, 2, 1))                         # (4, D, Mp_pad)

    grid = (4, Mp_pad // TM)
    out = pl.pallas_call(
        _fused_kernel,
        out_shape=jax.ShapeDtypeStruct((4, Cout, Mp_pad), jnp.float32),
        grid_spec=pltpu.PrefetchScalarGridSpec(
            num_scalar_prefetch=0,
            grid=grid,
            in_specs=[
                pl.BlockSpec((1, D, TM), lambda p, m: (p, 0, m)),
                pl.BlockSpec((1, Cout, D), lambda p, m: (p, 0, 0)),
                pl.BlockSpec((Cout, 1), lambda p, m: (0, 0)),
            ],
            out_specs=pl.BlockSpec((1, Cout, TM), lambda p, m: (p, 0, m)),
        ),
        compiler_params=pltpu.CompilerParams(
            dimension_semantics=("parallel", "parallel")),
    )(x_cols, w_all, b_eff)

    # -------------- scatter the 4 parity sub-grids back into NCHW --------------
    out = out[:, :, :Mp].reshape(2, 2, Cout, N, Hs, Ws)
    y = jnp.zeros((N, Cout, Ho, Wo), jnp.float32)
    for ph in range(2):
        for pw in range(2):
            nh = Hs if ph == 0 else H          # parity-1 last row/col is padding -> drop
            nw = Ws if pw == 0 else W
            y = y.at[:, :, ph::2, pw::2].set(
                jnp.transpose(out[ph, pw, :, :, :nh, :nw], (1, 0, 2, 3)))
    return y


def _reference(x_nchw, weight, conv_bias, extra_bias):
    """Pure-JAX reference using conv_general_dilated (independent of the Pallas path)."""
    K = KERNEL_SIZE
    w_oihw = jnp.transpose(weight, (1, 0, 2, 3))[:, :, ::-1, ::-1]    # (Cout, Cin, K, K), flipped
    y = jax.lax.conv_general_dilated(
        x_nchw, w_oihw,
        window_strides=(1, 1),
        padding=[(K - 1 - PADDING, K - 1 - PADDING + OUTPUT_PADDING)] * 2,
        lhs_dilation=(STRIDE, STRIDE),
        dimension_numbers=("NCHW", "OIHW", "NCHW"),
    )
    y = y + conv_bias[None, :, None, None] - extra_bias[None, :, :, :]
    return _pade_tanh_ref(y)


if __name__ == "__main__":
    key = jax.random.PRNGKey(0)
    k1, k2, k3, k4 = jax.random.split(key, 4)

    N, H, W = 2, 8, 8  # small spatial size; channels fixed by the module (32 -> 16)
    weight = (jax.random.normal(k1, (IN_CHANNELS, OUT_CHANNELS, KERNEL_SIZE, KERNEL_SIZE),
                                dtype=jnp.float32) * 0.05)
    conv_bias = jax.random.normal(k2, (OUT_CHANNELS,), dtype=jnp.float32) * 0.05
    extra_bias = jax.random.normal(k3, (OUT_CHANNELS, 1, 1), dtype=jnp.float32)
    x = jax.random.normal(k4, (N, IN_CHANNELS, H, W), dtype=jnp.float32)

    fn = jax.jit(conv_transpose_bias_tanh)
    out = jax.block_until_ready(fn(x, weight, conv_bias, extra_bias))
    ref = jax.block_until_ready(_reference(x, weight, conv_bias, extra_bias))

    assert out.shape == ref.shape, (out.shape, ref.shape)
    assert jnp.allclose(out, ref, rtol=1e-4, atol=1e-4), "Pallas result mismatch vs reference"

    print("KERNEL_OK")
</pallas_src>

<mosaic_0001>
module attributes {stable_mosaic.version = 11 : i64} {
  func.func @_fused_kernel(%arg0: i32, %arg1: i32, %arg2: memref<1x128x256xf32, #tpu.memory_space<vmem>>, %arg3: memref<1x16x128xf32, #tpu.memory_space<vmem>>, %arg4: memref<16x1xf32, #tpu.memory_space<vmem>>, %arg5: memref<1x16x256xf32, #tpu.memory_space<vmem>>) attributes {dimension_semantics = [#tpu.dimension_semantics<parallel>, #tpu.dimension_semantics<parallel>], iteration_bounds = array<i64: 4, 1>, scalar_prefetch = 0 : i64, scratch_operands = 0 : i64, tpu.core_type = #tpu.core_type<tc>, window_params = [{transform_indices = @transform_0, window_bounds = array<i64: 1, 128, 256>}, {transform_indices = @transform_1, window_bounds = array<i64: 1, 16, 128>}, {pipeline_mode = #tpu.pipeline_mode<synchronous>, transform_indices = @transform_2, window_bounds = array<i64: 16, 1>}, {transform_indices = @transform_3, window_bounds = array<i64: 1, 16, 256>}]} {
    %c0 = arith.constant 0 : index
    %c0_0 = arith.constant 0 : index
    %c0_1 = arith.constant 0 : index
    %0 = vector.load %arg3[%c0, %c0_0, %c0_1] : memref<1x16x128xf32, #tpu.memory_space<vmem>>, vector<1x16x128xf32>
    %1 = vector.shape_cast %0 : vector<1x16x128xf32> to vector<16x128xf32>
    %c0_2 = arith.constant 0 : index
    %c0_3 = arith.constant 0 : index
    %c0_4 = arith.constant 0 : index
    %2 = vector.load %arg2[%c0_2, %c0_3, %c0_4] : memref<1x128x256xf32, #tpu.memory_space<vmem>>, vector<1x128x256xf32>
    %3 = vector.shape_cast %2 : vector<1x128x256xf32> to vector<128x256xf32>
    %cst = arith.constant dense<0.000000e+00> : vector<16x256xf32>
    %4 = tpu.matmul %1, %3, %cst {dimension_numbers = #tpu.dot_dimension_numbers<[1], [0], [0], [1], [0, 0, 1, 1], [], []>} : vector<16x128xf32>, vector<128x256xf32>, vector<16x256xf32> -> vector<16x256xf32>
    %c0_5 = arith.constant 0 : index
    %c0_6 = arith.constant 0 : index
    %5 = vector.load %arg4[%c0_5, %c0_6] : memref<16x1xf32, #tpu.memory_space<vmem>>, vector<16x1xf32>
    %6 = vector.broadcast %5 : vector<16x1xf32> to vector<16x256xf32>
    %7 = arith.addf %4, %6 : vector<16x256xf32>
    %8 = arith.mulf %7, %7 : vector<16x256xf32>
    %cst_7 = arith.constant 3.780000e+02 : f32
    %9 = vector.broadcast %cst_7 : f32 to vector<16x256xf32>
    %10 = arith.addf %9, %8 : vector<16x256xf32>
    %11 = arith.mulf %8, %10 : vector<16x256xf32>
    %cst_8 = arith.constant 1.732500e+04 : f32
    %12 = vector.broadcast %cst_8 : f32 to vector<16x256xf32>
    %13 = arith.addf %12, %11 : vector<16x256xf32>
    %14 = arith.mulf %8, %13 : vector<16x256xf32>
    %cst_9 = arith.constant 1.351350e+05 : f32
    %15 = vector.broadcast %cst_9 : f32 to vector<16x256xf32>
    %16 = arith.addf %15, %14 : vector<16x256xf32>
    %17 = arith.mulf %7, %16 : vector<16x256xf32>
    %cst_10 = arith.constant 2.800000e+01 : f32
    %18 = vector.broadcast %cst_10 : f32 to vector<16x256xf32>
    %19 = arith.mulf %18, %8 : vector<16x256xf32>
    %cst_11 = arith.constant 3.150000e+03 : f32
    %20 = vector.broadcast %cst_11 : f32 to vector<16x256xf32>
    %21 = arith.addf %20, %19 : vector<16x256xf32>
    %22 = arith.mulf %8, %21 : vector<16x256xf32>
    %cst_12 = arith.constant 6.237000e+04 : f32
    %23 = vector.broadcast %cst_12 : f32 to vector<16x256xf32>
    %24 = arith.addf %23, %22 : vector<16x256xf32>
    %25 = arith.mulf %8, %24 : vector<16x256xf32>
    %cst_13 = arith.constant 1.351350e+05 : f32
    %26 = vector.broadcast %cst_13 : f32 to vector<16x256xf32>
    %27 = arith.addf %26, %25 : vector<16x256xf32>
    %28 = tpu.reciprocal %27 : vector<16x256xf32> -> vector<16x256xf32>
    %29 = arith.mulf %17, %28 : vector<16x256xf32>
    %c0_14 = arith.constant 0 : index
    %c0_15 = arith.constant 0 : index
    %c0_16 = arith.constant 0 : index
    %30 = vector.load %arg5[%c0_14, %c0_15, %c0_16] : memref<1x16x256xf32, #tpu.memory_space<vmem>>, vector<1x16x256xf32>
    %31 = vector.shape_cast %30 : vector<1x16x256xf32> to vector<16x256xf32>
    %32 = vector.shape_cast %29 : vector<16x256xf32> to vector<1x16x256xf32>
    tpu.vector_store %arg5[%c0_14, %c0_15, %c0_16], %32 {strides = array<i32>} : memref<1x16x256xf32, #tpu.memory_space<vmem>>, vector<1x16x256xf32>,
    return
  }
  func.func @transform_0(%arg0: i32, %arg1: i32) -> (i32, i32, i32) {
    %c0_i32 = arith.constant 0 : i32
    %c0_i32_0 = arith.constant 0 : i32
    return %arg0, %c0_i32, %arg1 : i32, i32, i32
  }
  func.func @transform_1(%arg0: i32, %arg1: i32) -> (i32, i32, i32) {
    %c0_i32 = arith.constant 0 : i32
    %c0_i32_0 = arith.constant 0 : i32
    %c0_i32_1 = arith.constant 0 : i32
    return %arg0, %c0_i32, %c0_i32_0 : i32, i32, i32
  }
  func.func @transform_2(%arg0: i32, %arg1: i32) -> (i32, i32) {
    %c0_i32 = arith.constant 0 : i32
    %c0_i32_0 = arith.constant 0 : i32
    %c0_i32_1 = arith.constant 0 : i32
    return %c0_i32, %c0_i32_0 : i32, i32
  }
  func.func @transform_3(%arg0: i32, %arg1: i32) -> (i32, i32, i32) {
    %c0_i32 = arith.constant 0 : i32
    %c0_i32_0 = arith.constant 0 : i32
    return %arg0, %c0_i32, %arg1 : i32, i32, i32
  }
}

</mosaic_0001>

<llo_original>
// kernel: conv_transpose_bias_tanh.1
$region0: #{conv_transpose_bias_tanh.1}
  #allocation0 [shape = 'u32[]', space=smem, size = 0x4, offset = 0x4, fixed_abs, tag = 'smem constant byte address 0x4 - core index']
  #allocation1 [shape = 'u32[144,128]{1,0:T(1,128)}', space=vmem, size = 0x12000, scoped, tag = 'internal scratch']
  %s0 = inlined_call_operand.vmem [shape: f32[4,128,256], index: 0, kind: input, shape index: {}]
  %s1 = inlined_call_operand.vmem [shape: f32[4,16,128], index: 1, kind: input, shape index: {}]
  %s2 = inlined_call_operand.vmem [shape: f32[16,1], index: 2, kind: input, shape index: {}]
  %s3 = inlined_call_operand.vmem [shape: f32[4,16,256], index: 3, kind: output, shape index: {}]
  %s4 = sld [smem:[#allocation0]]
  $region45: #{conv_transpose_bias_tanh.1} parent=0
    _
  %s6 = ssub.s32 1, %s4
  %s7 = scalar_select 0, %s6, %s4
  loop: start=0, step=1, limit=6
  $region2: #{conv_transpose_bias_tanh.1} parent=0 // loop_pre_header
    _
  $region3: #{conv_transpose_bias_tanh.1} parent=0 // loop_header
    %s9 = sphi 0, %s13
    %p10 = scmp.ge.s32.totalorder %s9, 6
    %s16 = sphi 0, %s28
    %s17 = sphi 0, %s24
    %s18 = sphi 0, %s16
    %s19 = sphi 0, %s17
    %s20 = sphi 0, %s18
    %s21 = sphi 0, %s19
    %s33 = sphi 0, %s35
    %s36 = sphi 0, %s33
    %s37 = sphi 0, %s36
    %s53 = sphi 0, %s37
    %s59 = sphi 0, %s61
    %s62 = sphi 0, %s59
    %s63 = sphi 0, %s62
    %s79 = sphi 0, %s63
    %s83 = sphi 0, %s83
    %s85 = sphi 0, %s83
    %s86 = sphi 0, %s85
    %s100 = sphi 0, %s86
    %s108 = sphi 0, %s110
    %s111 = sphi 0, %s108
    %s112 = sphi 0, %s111
    %s128 = sphi 0, %s112
  $region4: #{conv_transpose_bias_tanh.1} parent=0 // loop_header_branch
    %12 = sbr.rel (%p10) target = $region8
  $region5: #{conv_transpose_bias_tanh.1} parent=0 // loop_body
    %s14 = ssub.s32 %s9, 1
    %s15 = ssub.s32 %s9, 2
    %s22 = sadd.s32 1, %s17
    %p23 = scmp.ge.s32.totalorder %s22, 1
    %s24 = scalar_select %p23, 0, %s22
    %s25 = sadd.s32 1, %s16
    %s26 = scalar_select %p23, %s25, %s16
    %p27 = scmp.ge.s32.totalorder %s26, 4
    %s28 = scalar_select %p27, 0, %s26
    %s29 = ssub.s32 %s16, %s28
    %s30 = ssub.s32 %s17, %s24
    %s31 = sor.u32 %s29, %s30
    %p32 = scmp.eq.s32.totalorder %s31, 0
    %s34 = sadd.s32 %s33, 1
    %s35 = scalar_select %p32, %s33, %s34
    %p38 = pneg %p32
    %p39 = scmp.eq.s32.totalorder %s9, 3
    %p40 = por %p38, %p39
    %p41 = scmp.ne.s32.totalorder %s33, %s36
    %p42 = scmp.eq.s32.totalorder %s9, 0
    %p43 = por %p41, %p42
    %p44 = scmp.ne.s32.totalorder %s33, %s36
    %p45 = scmp.eq.s32.totalorder %s14, 3
    %p46 = por %p44, %p45
    %p47 = scmp.ne.s32.totalorder %s36, %s37
    %p48 = scmp.eq.s32.totalorder %s14, 0
    %p49 = por %p47, %p48
    %p50 = scmp.ne.s32.totalorder %s36, %s37
    %p51 = scmp.eq.s32.totalorder %s15, 3
    %p52 = por %p50, %p51
    %p54 = scmp.ne.s32.totalorder %s37, %s53
    %p55 = scmp.eq.s32.totalorder %s15, 0
    %p56 = por %p54, %p55
    %s57 = ssub.s32 %s16, %s28
    %p58 = scmp.eq.s32.totalorder %s57, 0
    %s60 = sadd.s32 %s59, 1
    %s61 = scalar_select %p58, %s59, %s60
    %p64 = pneg %p58
    %p65 = scmp.eq.s32.totalorder %s9, 3
    %p66 = por %p64, %p65
    %p67 = scmp.ne.s32.totalorder %s59, %s62
    %p68 = scmp.eq.s32.totalorder %s9, 0
    %p69 = por %p67, %p68
    %p70 = scmp.ne.s32.totalorder %s59, %s62
    %p71 = scmp.eq.s32.totalorder %s14, 3
    %p72 = por %p70, %p71
    %p73 = scmp.ne.s32.totalorder %s62, %s63
    %p74 = scmp.eq.s32.totalorder %s14, 0
    %p75 = por %p73, %p74
    %p76 = scmp.ne.s32.totalorder %s62, %s63
    %p77 = scmp.eq.s32.totalorder %s15, 3
    %p78 = por %p76, %p77
    %p80 = scmp.ne.s32.totalorder %s63, %s79
    %p81 = scmp.eq.s32.totalorder %s15, 0
    %p82 = por %p80, %p81
    %s84 = sadd.s32 %s83, 1
    %p87 = scmp.eq.s32.totalorder %s9, 3
    %p88 = scmp.ne.s32.totalorder %s83, %s85
    %p89 = scmp.eq.s32.totalorder %s9, 0
    %p90 = por %p88, %p89
    %p91 = scmp.ne.s32.totalorder %s83, %s85
    %p92 = scmp.eq.s32.totalorder %s14, 3
    %p93 = por %p91, %p92
    %p94 = scmp.ne.s32.totalorder %s85, %s86
    %p95 = scmp.eq.s32.totalorder %s14, 0
    %p96 = por %p94, %p95
    %p97 = scmp.ne.s32.totalorder %s85, %s86
    %p98 = scmp.eq.s32.totalorder %s15, 3
    %p99 = por %p97, %p98
    %p101 = scmp.ne.s32.totalorder %s86, %s100
    %p102 = scmp.eq.s32.totalorder %s15, 0
    %p103 = por %p101, %p102
    %s104 = ssub.s32 %s16, %s28
    %s105 = ssub.s32 %s17, %s24
    %s106 = sor.u32 %s104, %s105
    %p107 = scmp.eq.s32.totalorder %s106, 0
    %s109 = sadd.s32 %s108, 1
    %s110 = scalar_select %p107, %s108, %s109
    %p113 = pneg %p107
    %p114 = scmp.eq.s32.totalorder %s9, 3
    %p115 = por %p113, %p114
    %p116 = scmp.ne.s32.totalorder %s108, %s111
    %p117 = scmp.eq.s32.totalorder %s9, 0
    %p118 = por %p116, %p117
    %p119 = scmp.ne.s32.totalorder %s108, %s111
    %p120 = scmp.eq.s32.totalorder %s14, 3
    %p121 = por %p119, %p120
    %p122 = scmp.ne.s32.totalorder %s111, %s112
    %p123 = scmp.eq.s32.totalorder %s14, 0
    %p124 = por %p122, %p123
    %p125 = scmp.ne.s32.totalorder %s111, %s112
    %p126 = scmp.eq.s32.totalorder %s15, 3
    %p127 = por %p125, %p126
    %p129 = scmp.ne.s32.totalorder %s112, %s128
    %p130 = scmp.eq.s32.totalorder %s15, 0
    %p131 = por %p129, %p130
    %p132 = scmp.le.s32.totalorder 1, %s9
    %p133 = scmp.lt.s32.totalorder %s9, 5
    %p134 = pnand %p132, %p133
    %p135 = pneg %p134
    // Predicated region
    $region9: #{conv_transpose_bias_tanh.1} parent=5 // pred_check
      _
    $region10: #{conv_transpose_bias_tanh.1} parent=5 // pred_check_branch
      %137 = sbr.rel (%p134) target = $region12
    $region11: #{conv_transpose_bias_tanh.1} parent=5 // pred_region
      %s138 = ssub.s32 %s9, 1
      // Predicated region
      $region13: #{conv_transpose_bias_tanh.1} parent=11 // pred_check
        %p139 = pneg %p96
      $region14: #{conv_transpose_bias_tanh.1} parent=11 // pred_check_branch
        %141 = sbr.rel (%p139) target = $region16
      $region15: #{conv_transpose_bias_tanh.1} parent=11 // pred_region
        _
      $region16: #{conv_transpose_bias_tanh.1} parent=11 // pred_fallthru
        _
    $region12: #{conv_transpose_bias_tanh.1} parent=5 // pred_fallthru
      _
    %p142 = scmp.lt.s32.totalorder %s9, 4
    // Predicated region
    $region17: #{conv_transpose_bias_tanh.1} parent=5 // pred_check
      %p143 = pneg %p142
    $region18: #{conv_transpose_bias_tanh.1} parent=5 // pred_check_branch
      %145 = sbr.rel (%p143) target = $region20
    $region19: #{conv_transpose_bias_tanh.1} parent=5 // pred_region
      // Predicated region
      $region21: #{conv_transpose_bias_tanh.1} parent=19 // pred_check
        %p146 = pneg %p43
      $region22: #{conv_transpose_bias_tanh.1} parent=19 // pred_check_branch
        %148 = sbr.rel (%p146) target = $region24
      $region23: #{conv_transpose_bias_tanh.1} parent=19 // pred_region
        %s149 = smul.u32 2, %s17
        %p150 = scmp.lt.s32.totalorder %s16, 3
        %s151 = scalar_select %p150, %s16, 3
        %p152 = scmp.lt.s32.totalorder %s149, 1
        %s153 = scalar_select %p152, %s149, 1
        %s154 = smul.addr %s151, 32
        %s155 = sadd.s32 %s153, %s154
        %s156 = smul.addr %s155, 8
        %s157 = scalar_lea.vmem %s0, %s156
        %s158 = smul.u32 2, %s17
      $region24: #{conv_transpose_bias_tanh.1} parent=19 // pred_fallthru
        _
      // Predicated region
      $region25: #{conv_transpose_bias_tanh.1} parent=19 // pred_check
        %p159 = pneg %p69
      $region26: #{conv_transpose_bias_tanh.1} parent=19 // pred_check_branch
        %161 = sbr.rel (%p159) target = $region28
      $region27: #{conv_transpose_bias_tanh.1} parent=19 // pred_region
        %p162 = scmp.lt.s32.totalorder %s16, 3
        %s163 = scalar_select %p162, %s16, 3
        %s164 = smul.addr %s163, 2
        %s165 = smul.addr %s164, 8
        %s166 = scalar_lea.vmem %s1, %s165
      $region28: #{conv_transpose_bias_tanh.1} parent=19 // pred_fallthru
        _
    $region20: #{conv_transpose_bias_tanh.1} parent=5 // pred_fallthru
      _
    %p167 = scmp.le.s32.totalorder 1, %s9
    %p168 = scmp.lt.s32.totalorder %s9, 5
    %p169 = pnand %p167, %p168
    %p170 = pneg %p169
    // Predicated region
    $region29: #{conv_transpose_bias_tanh.1} parent=5 // pred_check
      _
    $region30: #{conv_transpose_bias_tanh.1} parent=5 // pred_check_branch
      %172 = sbr.rel (%p169) target = $region32
    $region31: #{conv_transpose_bias_tanh.1} parent=5 // pred_region
      %s173 = ssub.s32 %s9, 1
      %s174 = smul.u32 2, %s19
      %p175 = scmp.lt.s32.totalorder %s18, 3
      %s176 = scalar_select %p175, %s18, 3
      %p177 = scmp.lt.s32.totalorder %s174, 1
      %s178 = scalar_select %p177, %s174, 1
      %s179 = smul.addr %s176, 32
      %s180 = sadd.s32 %s178, %s179
      %s181 = smul.addr %s180, 8
      %s182 = scalar_lea.vmem %s0, %s181
      %p183 = pneg %p49
      %p184 = pneg %p46
      %p185 = scmp.lt.s32.totalorder %s18, 3
      %s186 = scalar_select %p185, %s18, 3
      %s187 = smul.addr %s186, 2
      %s188 = smul.addr %s187, 8
      %s189 = scalar_lea.vmem %s1, %s188
      %p190 = pneg %p75
      %p191 = pneg %p72
      %p192 = pneg %p96
      %p193 = pneg %p93
      %p194 = pneg %p124
      %p195 = pneg %p121
      %s196 = smul.u32 2, %s19
      %p197 = scmp.lt.s32.totalorder %s18, 3
      %s198 = scalar_select %p197, %s18, 3
      %p199 = scmp.lt.s32.totalorder %s196, 1
      %s200 = scalar_select %p199, %s196, 1
      %s201 = smul.addr %s198, 4
      %s202 = sadd.s32 %s200, %s201
      %s203 = smul.addr %s202, 8
      %s204 = scalar_lea.vmem %s3, %s203
      %s205 = smul.u32 2, %s19
      %p206 = scmp.lt.s32.totalorder %s18, 3
      %s207 = scalar_select %p206, %s18, 3
      %p208 = scmp.lt.s32.totalorder %s205, 1
      %s209 = scalar_select %p208, %s205, 1
      %s210 = smul.addr %s207, 32
      %s211 = sadd.s32 %s209, %s210
      %s212 = smul.addr %s211, 8
      %s213 = scalar_lea.vmem %s0, %s212
      %s214 = smul.u32 2, %s19
      %p215 = scmp.lt.s32.totalorder %s18, 3
      %s216 = scalar_select %p215, %s18, 3
      %s217 = smul.addr %s216, 2
      %s218 = smul.addr %s217, 8
      %s219 = scalar_lea.vmem %s1, %s218
      %s220 = smul.u32 2, %s19
      %p221 = scmp.lt.s32.totalorder %s18, 3
      %s222 = scalar_select %p221, %s18, 3
      %p223 = scmp.lt.s32.totalorder %s220, 1
      %s224 = scalar_select %p223, %s220, 1
      %s225 = smul.addr %s222, 4
      %s226 = sadd.s32 %s224, %s225
      %s227 = smul.addr %s226, 8
      %s228 = scalar_lea.vmem %s3, %s227
      %s229 = smul.u32 2, %s19
      %v230 = vld [vmem:[%s219] sm:$0xff]
      %v231 = vld [vmem:[%s219 + $0x8] sm:$0xff]
      %v232 = vld [vmem:[%s213] sm:$0xff]
      %v233 = vld [vmem:[%s213 + $0x8] sm:$0xff]
      %v234 = vld [vmem:[%s213 + $0x10] sm:$0xff]
      %v235 = vld [vmem:[%s213 + $0x18] sm:$0xff]
      %v236 = vld [vmem:[%s213 + $0x20] sm:$0xff]
      %v237 = vld [vmem:[%s213 + $0x28] sm:$0xff]
      %v238 = vld [vmem:[%s213 + $0x30] sm:$0xff]
      %v239 = vld [vmem:[%s213 + $0x38] sm:$0xff]
      %v240 = vld [vmem:[%s213 + $0x40] sm:$0xff]
      %v241 = vld [vmem:[%s213 + $0x48] sm:$0xff]
      %v242 = vld [vmem:[%s213 + $0x50] sm:$0xff]
      %v243 = vld [vmem:[%s213 + $0x58] sm:$0xff]
      %v244 = vld [vmem:[%s213 + $0x60] sm:$0xff]
      %v245 = vld [vmem:[%s213 + $0x68] sm:$0xff]
      %v246 = vld [vmem:[%s213 + $0x70] sm:$0xff]
      %v247 = vld [vmem:[%s213 + $0x78] sm:$0xff]
      %v248 = vld [vmem:[%s213 + $0x80] sm:$0xff]
      %v249 = vld [vmem:[%s213 + $0x88] sm:$0xff]
      %v250 = vld [vmem:[%s213 + $0x90] sm:$0xff]
      %v251 = vld [vmem:[%s213 + $0x98] sm:$0xff]
      %v252 = vld [vmem:[%s213 + $0xa0] sm:$0xff]
      %v253 = vld [vmem:[%s213 + $0xa8] sm:$0xff]
      %v254 = vld [vmem:[%s213 + $0xb0] sm:$0xff]
      %v255 = vld [vmem:[%s213 + $0xb8] sm:$0xff]
      %v256 = vld [vmem:[%s213 + $0xc0] sm:$0xff]
      %v257 = vld [vmem:[%s213 + $0xc8] sm:$0xff]
      %v258 = vld [vmem:[%s213 + $0xd0] sm:$0xff]
      %v259 = vld [vmem:[%s213 + $0xd8] sm:$0xff]
      %v260 = vld [vmem:[%s213 + $0xe0] sm:$0xff]
      %v261 = vld [vmem:[%s213 + $0xe8] sm:$0xff]
      %v262 = vld [vmem:[%s213 + $0xf0] sm:$0xff]
      %v263 = vld [vmem:[%s213 + $0xf8] sm:$0xff]
      %v264 = vld [vmem:[%s2] sm:$0xff]
      %v265 = vld [vmem:[%s2 + $0x8] sm:$0xff]
      %267 = vset.pattern.permute.xlu0 0
      %268 = vperm.xlu0 %267, %v264
      %v269 = vpop.permute.xlu0 %268
      %272 = vset.pattern.permute.xlu0 0
      %273 = vperm.xlu0 %272, %v265
      %v274 = vpop.permute.xlu0 %273
      %276 = vmatprep.subr.mxu0 %v233
      %277 = vmatpush1.msra.mxu0 %v232
      %278 = vmatprep.subr.mxu0 %v235
      %279 = vmatpush1.msra.mxu0 %v234
      %280 = vmatprep.subr.mxu0 %v237
      %281 = vmatpush1.msra.mxu0 %v236
      %282 = vmatprep.subr.mxu0 %v239
      %283 = vmatpush1.msra.mxu0 %v238
      %284 = vmatprep.subr.mxu0 %v241
      %285 = vmatpush1.msra.mxu0 %v240
      %286 = vmatprep.subr.mxu0 %v243
      %287 = vmatpush1.msra.mxu0 %v242
      %288 = vmatprep.subr.mxu0 %v245
      %289 = vmatpush1.msra.mxu0 %v244
      %290 = vmatprep.subr.mxu0 %v247
      %291 = vmatpush1.msra.mxu0 %v246
      %292 = vmatprep.subr.mxu0 %v249
      %293 = vmatpush1.msra.mxu0 %v248
      %294 = vmatprep.subr.mxu0 %v251
      %295 = vmatpush1.msra.mxu0 %v250
      %296 = vmatprep.subr.mxu0 %v253
      %297 = vmatpush1.msra.mxu0 %v252
      %298 = vmatprep.subr.mxu0 %v255
      %299 = vmatpush1.msra.mxu0 %v254
      %300 = vmatprep.subr.mxu0 %v257
      %301 = vmatpush1.msra.mxu0 %v256
      %302 = vmatprep.subr.mxu0 %v259
      %303 = vmatpush1.msra.mxu0 %v258
      %304 = vmatprep.subr.mxu0 %v261
      %305 = vmatpush1.msra.mxu0 %v260
      %306 = vmatprep.subr.mxu0 %v263
      %307 = vmatpush1.msra.mxu0 %v262
      %308 = vmatprep.subr.mxu0 0.0
      %309 = vmatpush1.msra.mxu0 0.0
      %310 = vmatprep.subr.mxu0 0.0
      %311 = vmatpush1.msra.mxu0 0.0
      %312 = vmatprep.subr.mxu0 0.0
      %313 = vmatpush1.msra.mxu0 0.0
      %314 = vmatprep.subr.mxu0 0.0
      %315 = vmatpush1.msra.mxu0 0.0
      %316 = vmatprep.subr.mxu0 0.0
      %317 = vmatpush1.msra.mxu0 0.0
      %318 = vmatprep.subr.mxu0 0.0
      %319 = vmatpush1.msra.mxu0 0.0
      %320 = vmatprep.subr.mxu0 0.0
      %321 = vmatpush1.msra.mxu0 0.0
      %322 = vmatprep.subr.mxu0 0.0
      %323 = vmatpush1.msra.mxu0 0.0
      %324 = vmatprep.subr.mxu0 0.0
      %325 = vmatpush1.msra.mxu0 0.0
      %326 = vmatprep.subr.mxu0 0.0
      %327 = vmatpush1.msra.mxu0 0.0
      %328 = vmatprep.subr.mxu0 0.0
      %329 = vmatpush1.msra.mxu0 0.0
      %330 = vmatprep.subr.mxu0 0.0
      %331 = vmatpush1.msra.mxu0 0.0
      %332 = vmatprep.subr.mxu0 0.0
      %333 = vmatpush1.msra.mxu0 0.0
      %334 = vmatprep.subr.mxu0 0.0
      %335 = vmatpush1.msra.mxu0 0.0
      %336 = vmatprep.subr.mxu0 0.0
      %337 = vmatpush1.msra.mxu0 0.0
      %338 = vmatprep.subr.mxu0 0.0
      %339 = vmatpush1.msra.mxu0 0.0
      %340 = vmatprep.mubr.f32.mxu0 0.0
      %341 = vmatmul.mubr.f32.gmra.mrb[0].mxu0 %v230
      %v342 = vpop.f32.mrb[0].mxu0
      %v343 = vadd.f32 %v269, %v342
      %v344 = vpop.f32.mrb[0].mxu0
      %v345 = vadd.f32 %v269, %v344
      %346 = vmatprep.mubr.f32.mxu0 0.0
      %347 = vmatmul.mubr.f32.gmra.mrb[0].mxu0 %v231
      %v348 = vpop.f32.mrb[0].mxu0
      %v349 = vadd.f32 %v274, %v348
      %v350 = vpop.f32.mrb[0].mxu0
      %v351 = vadd.f32 %v274, %v350
      %352 = vdwg.mxu0
      %v353 = vmul.f32 %v343, %v343
      %v354 = vmul.f32 %v345, %v345
      %v355 = vmul.f32 %v349, %v349
      %v356 = vmul.f32 %v351, %v351
      %v357 = vadd.f32 %v353, 378.0
      %v358 = vadd.f32 %v354, 378.0
      %v359 = vadd.f32 %v355, 378.0
      %v360 = vadd.f32 %v356, 378.0
      %v361 = vmul.f32 %v353, %v357
      %v362 = vmul.f32 %v354, %v358
      %v363 = vmul.f32 %v355, %v359
      %v364 = vmul.f32 %v356, %v360
      %v365 = vadd.f32 %v361, 17325.0
      %v366 = vadd.f32 %v362, 17325.0
      %v367 = vadd.f32 %v363, 17325.0
      %v368 = vadd.f32 %v364, 17325.0
      %v369 = vmul.f32 %v353, %v365
      %v370 = vmul.f32 %v354, %v366
      %v371 = vmul.f32 %v355, %v367
      %v372 = vmul.f32 %v356, %v368
      %v373 = vadd.f32 %v369, 135135.0
      %v374 = vadd.f32 %v370, 135135.0
      %v375 = vadd.f32 %v371, 135135.0
      %v376 = vadd.f32 %v372, 135135.0
      %v377 = vmul.f32 %v343, %v373
      %v378 = vmul.f32 %v345, %v374
      %v379 = vmul.f32 %v349, %v375
      %v380 = vmul.f32 %v351, %v376
      %v381 = vmul.f32 %v353, 28.0
      %v382 = vmul.f32 %v354, 28.0
      %v383 = vmul.f32 %v355, 28.0
      %v384 = vmul.f32 %v356, 28.0
      %v385 = vadd.f32 %v381, 3150.0
      %v386 = vadd.f32 %v382, 3150.0
      %v387 = vadd.f32 %v383, 3150.0
      %v388 = vadd.f32 %v384, 3150.0
      %v389 = vmul.f32 %v353, %v385
      %v390 = vmul.f32 %v354, %v386
      %v391 = vmul.f32 %v355, %v387
      %v392 = vmul.f32 %v356, %v388
      %v393 = vadd.f32 %v389, 62370.0
      %v394 = vadd.f32 %v390, 62370.0
      %v395 = vadd.f32 %v391, 62370.0
      %v396 = vadd.f32 %v392, 62370.0
      %v397 = vmul.f32 %v353, %v393
      %v398 = vmul.f32 %v354, %v394
      %v399 = vmul.f32 %v355, %v395
      %v400 = vmul.f32 %v356, %v396
      %v401 = vadd.f32 %v397, 135135.0
      %v402 = vadd.f32 %v398, 135135.0
      %v403 = vadd.f32 %v399, 135135.0
      %v404 = vadd.f32 %v400, 135135.0
      %v405 = vrcp.pop %v401
      %v406 = vrcp.pop %v402
      %v407 = vrcp.pop %v403
      %v408 = vrcp.pop %v404
      %v409 = vmul.f32 %v377, %v405
      %v410 = vmul.f32 %v378, %v406
      %v411 = vmul.f32 %v379, %v407
      %v412 = vmul.f32 %v380, %v408
      %413 = vst [vmem:[%s228] sm:$0xff] %v409
      %414 = vst [vmem:[%s228 + $0x8] sm:$0xff] %v410
      %415 = vst [vmem:[%s228 + $0x10] sm:$0xff] %v411
      %416 = vst [vmem:[%s228 + $0x18] sm:$0xff] %v412
      %s417 = smul.u32 2, %s19
      %p418 = scmp.lt.s32.totalorder %s18, 3
      %s419 = scalar_select %p418, %s18, 3
      %p420 = scmp.lt.s32.totalorder %s417, 1
      %s421 = scalar_select %p420, %s417, 1
      %s422 = smul.addr %s419, 4
      %s423 = sadd.s32 %s421, %s422
      %s424 = smul.addr %s423, 8
      %s425 = scalar_lea.vmem %s3, %s424
      // Predicated region
      $region33: #{conv_transpose_bias_tanh.1} parent=31 // pred_check
        %p426 = pneg %p121
      $region34: #{conv_transpose_bias_tanh.1} parent=31 // pred_check_branch
        %428 = sbr.rel (%p426) target = $region36
      $region35: #{conv_transpose_bias_tanh.1} parent=31 // pred_region
        %s429 = smul.u32 2, %s19
      $region36: #{conv_transpose_bias_tanh.1} parent=31 // pred_fallthru
        _
    $region32: #{conv_transpose_bias_tanh.1} parent=5 // pred_fallthru
      _
    %p430 = scmp.le.s32.totalorder 2, %s9
    // Predicated region
    $region37: #{conv_transpose_bias_tanh.1} parent=5 // pred_check
      %p431 = pneg %p430
    $region38: #{conv_transpose_bias_tanh.1} parent=5 // pred_check_branch
      %433 = sbr.rel (%p431) target = $region40
    $region39: #{conv_transpose_bias_tanh.1} parent=5 // pred_region
      %s434 = ssub.s32 %s9, 2
      // Predicated region
      $region41: #{conv_transpose_bias_tanh.1} parent=39 // pred_check
        %p435 = pneg %p127
      $region42: #{conv_transpose_bias_tanh.1} parent=39 // pred_check_branch
        %437 = sbr.rel (%p435) target = $region44
      $region43: #{conv_transpose_bias_tanh.1} parent=39 // pred_region
        %s438 = smul.u32 2, %s21
        %p439 = scmp.lt.s32.totalorder %s20, 3
        %s440 = scalar_select %p439, %s20, 3
        %p441 = scmp.lt.s32.totalorder %s438, 1
        %s442 = scalar_select %p441, %s438, 1
        %s443 = smul.addr %s440, 4
        %s444 = sadd.s32 %s442, %s443
        %s445 = smul.addr %s444, 8
        %s446 = scalar_lea.vmem %s3, %s445
      $region44: #{conv_transpose_bias_tanh.1} parent=39 // pred_fallthru
        _
    $region40: #{conv_transpose_bias_tanh.1} parent=5 // pred_fallthru
      _
  $region6: #{conv_transpose_bias_tanh.1} parent=0 // loop_footer
    %s13 = sadd.s32 1, %s9
  $region7: #{conv_transpose_bias_tanh.1} parent=0 // loop_footer_branch
    %8 = sbr.rel target = $region3
  $region8: #{conv_transpose_bias_tanh.1} parent=0 // loop_exit
    _

</llo_original>
